<compile_context>
chip_gen: v7x
topology: tpu7x:2x2x1
jax: 0.10.0
libtpu: 0.0.40
codegen_flags: <defaults>
</compile_context>

<pallas_src>
import jax
import jax.numpy as jnp
from jax.experimental import pallas as pl
from jax.experimental.pallas import tpu as pltpu


def mlp_kernel(x_ref, w1_ref, b1_ref, w2_ref, b2_ref, w3_ref, b3_ref, o_ref):
    def sigmoid(z):
        # One EUP op per element (vs exp + divide).
        return 0.5 * (jnp.tanh(0.5 * z) + 1.0)

    # Layer 1: contract feature axes of W1 (60, 6) and x (tile, 6) on the MXU
    # (A @ B^T form) so the batch lands on the lane axis: result (60, tile).
    nt_dims = (((1,), (1,)), ((), ()))
    z1 = jax.lax.dot_general(w1_ref[...], x_ref[...], nt_dims,
                             preferred_element_type=jnp.float32)
    h1 = sigmoid(z1 + b1_ref[...])

    # Layer 2: (10, 60) @ (60, tile) -> (10, tile)
    z2 = jnp.dot(w2_ref[...], h1, preferred_element_type=jnp.float32)
    h2 = sigmoid(z2 + b2_ref[...])

    # Layer 3: (1, 10) @ (10, tile) -> (1, tile), lane-dense output store.
    z3 = jnp.dot(w3_ref[...], h2, preferred_element_type=jnp.float32)
    o_ref[...] = sigmoid(z3 + b3_ref[...])


def _round_up(n, m):
    return ((n + m - 1) // m) * m


def titanic_classifier(x, params, max_lane_tile=8192):
    """Fused forward pass.

    x: (B, 6) float32.
    params: (w1, b1, w2, b2, w3, b3) in PyTorch orientation:
        w1 (60, 6),  b1 (60, 1)
        w2 (10, 60), b2 (10, 1)
        w3 (1, 10),  b3 (1, 1)
    Returns (B, 1) float32.
    """
    w1, b1, w2, b2, w3, b3 = params
    x = x.astype(jnp.float32)
    B = x.shape[0]

    # Batch-adaptive lane tile: largest tile (<= max_lane_tile) covering B.
    tile = min(_round_up(B, 128), _round_up(max_lane_tile, 128))
    steps = pl.cdiv(B, tile)
    if steps > 1 and steps % 2 == 1:
        # Even number of grid steps -> balanced split across the two v7x TCs.
        steps += 1
        tile = _round_up(pl.cdiv(B, steps), 128)
        steps = pl.cdiv(B, tile)

    resident = lambda a: pl.BlockSpec(a.shape, lambda i: (0, 0))

    out = pl.pallas_call(
        mlp_kernel,
        out_shape=jax.ShapeDtypeStruct((1, B), jnp.float32),
        grid_spec=pltpu.PrefetchScalarGridSpec(
            num_scalar_prefetch=0,
            grid=(steps,),
            in_specs=[
                pl.BlockSpec((tile, 6), lambda i: (i, 0)),   # x batch tile
                resident(w1), resident(b1),
                resident(w2), resident(b2),
                resident(w3), resident(b3),
            ],
            out_specs=pl.BlockSpec((1, tile), lambda i: (0, i)),
        ),
        compiler_params=pltpu.CompilerParams(
            dimension_semantics=("parallel",),
        ),
    )(x, w1, b1, w2, b2, w3, b3)

    # (1, B) -> (B, 1): identical row-major order, so this reshape is free.
    return out.reshape(B, 1)


def init_params(key):
    """Deterministic PyTorch-style (uniform +-1/sqrt(fan_in)) init.

    Weights stored as (out_features, in_features), biases as (out_features, 1).
    """
    dims = [(6, 60), (60, 10), (10, 1)]
    params = []
    for (fan_in, fan_out) in dims:
        key, kw, kb = jax.random.split(key, 3)
        bound = 1.0 / jnp.sqrt(fan_in)
        w = jax.random.uniform(kw, (fan_out, fan_in), jnp.float32, -bound, bound)
        b = jax.random.uniform(kb, (fan_out, 1), jnp.float32, -bound, bound)
        params.extend([w, b])
    return tuple(params)


def reference_forward(x, params):
    w1, b1, w2, b2, w3, b3 = params
    h1 = jax.nn.sigmoid(x @ w1.T + b1.T)
    h2 = jax.nn.sigmoid(h1 @ w2.T + b2.T)
    return jax.nn.sigmoid(h2 @ w3.T + b3.T)


if __name__ == "__main__":
    key = jax.random.PRNGKey(0)
    kp, kx1, kx2, kx3 = jax.random.split(key, 4)
    params = init_params(kp)

    def check(x, **kw):
        out = titanic_classifier(x, params, **kw)
        jax.block_until_ready(out)
        ref = reference_forward(x, params)
        assert out.shape == (x.shape[0], 1), out.shape
        # Default MXU precision on TPU runs f32 matmuls as bf16 passes, so use
        # a tolerance that absorbs that (still far below any real-bug error).
        assert jnp.allclose(out, ref, atol=1e-3, rtol=1e-3), (
            "max abs err", float(jnp.max(jnp.abs(out - ref))))

    # Tiny batch (single ragged block), the module's typical DataLoader usage.
    check(jax.random.normal(kx1, (8, 6), jnp.float32))
    # Batch not a multiple of 128: exercises masked last-block writes.
    check(jax.random.normal(kx2, (1000, 6), jnp.float32))
    # Force a multi-step grid (even step count, ragged last block).
    check(jax.random.normal(kx3, (1280, 6), jnp.float32), max_lane_tile=512)

    print("KERNEL_OK")
</pallas_src>

<mosaic_0001>
module attributes {stable_mosaic.version = 11 : i64} {
  func.func @mlp_kernel(%arg0: i32, %arg1: memref<128x6xf32, #tpu.memory_space<vmem>>, %arg2: memref<60x6xf32, #tpu.memory_space<vmem>>, %arg3: memref<60x1xf32, #tpu.memory_space<vmem>>, %arg4: memref<10x60xf32, #tpu.memory_space<vmem>>, %arg5: memref<10x1xf32, #tpu.memory_space<vmem>>, %arg6: memref<1x10xf32, #tpu.memory_space<vmem>>, %arg7: memref<1x1xf32, #tpu.memory_space<vmem>>, %arg8: memref<1x128xf32, #tpu.memory_space<vmem>>) attributes {dimension_semantics = [#tpu.dimension_semantics<parallel>], iteration_bounds = array<i64: 1>, scalar_prefetch = 0 : i64, scratch_operands = 0 : i64, tpu.core_type = #tpu.core_type<tc>, window_params = [{transform_indices = @transform_0, window_bounds = array<i64: 128, 6>}, {pipeline_mode = #tpu.pipeline_mode<synchronous>, transform_indices = @transform_1, window_bounds = array<i64: 60, 6>}, {pipeline_mode = #tpu.pipeline_mode<synchronous>, transform_indices = @transform_2, window_bounds = array<i64: 60, 1>}, {pipeline_mode = #tpu.pipeline_mode<synchronous>, transform_indices = @transform_3, window_bounds = array<i64: 10, 60>}, {pipeline_mode = #tpu.pipeline_mode<synchronous>, transform_indices = @transform_4, window_bounds = array<i64: 10, 1>}, {pipeline_mode = #tpu.pipeline_mode<synchronous>, transform_indices = @transform_5, window_bounds = array<i64: 1, 10>}, {pipeline_mode = #tpu.pipeline_mode<synchronous>, transform_indices = @transform_6, window_bounds = array<i64: 1, 1>}, {transform_indices = @transform_7, window_bounds = array<i64: 1, 128>}]} {
    %c0 = arith.constant 0 : index
    %c0_0 = arith.constant 0 : index
    %0 = vector.load %arg2[%c0, %c0_0] : memref<60x6xf32, #tpu.memory_space<vmem>>, vector<60x6xf32>
    %c0_1 = arith.constant 0 : index
    %c0_2 = arith.constant 0 : index
    %1 = vector.load %arg1[%c0_1, %c0_2] : memref<128x6xf32, #tpu.memory_space<vmem>>, vector<128x6xf32>
    %cst = arith.constant dense<0.000000e+00> : vector<60x128xf32>
    %2 = tpu.matmul %0, %1, %cst {dimension_numbers = #tpu.dot_dimension_numbers<[1], [1], [0], [0], [0, 0, 1, 0], [], []>} : vector<60x6xf32>, vector<128x6xf32>, vector<60x128xf32> -> vector<60x128xf32>
    %c0_3 = arith.constant 0 : index
    %c0_4 = arith.constant 0 : index
    %3 = vector.load %arg3[%c0_3, %c0_4] : memref<60x1xf32, #tpu.memory_space<vmem>>, vector<60x1xf32>
    %4 = vector.broadcast %3 : vector<60x1xf32> to vector<60x128xf32>
    %5 = arith.addf %2, %4 : vector<60x128xf32>
    %cst_5 = arith.constant 5.000000e-01 : f32
    %6 = vector.broadcast %cst_5 : f32 to vector<60x128xf32>
    %7 = arith.mulf %6, %5 : vector<60x128xf32>
    %8 = math.tanh %7 : vector<60x128xf32>
    %cst_6 = arith.constant 1.000000e+00 : f32
    %9 = vector.broadcast %cst_6 : f32 to vector<60x128xf32>
    %10 = arith.addf %8, %9 : vector<60x128xf32>
    %cst_7 = arith.constant 5.000000e-01 : f32
    %11 = vector.broadcast %cst_7 : f32 to vector<60x128xf32>
    %12 = arith.mulf %11, %10 : vector<60x128xf32>
    %c0_8 = arith.constant 0 : index
    %c0_9 = arith.constant 0 : index
    %13 = vector.load %arg4[%c0_8, %c0_9] : memref<10x60xf32, #tpu.memory_space<vmem>>, vector<10x60xf32>
    %cst_10 = arith.constant dense<0.000000e+00> : vector<10x128xf32>
    %14 = tpu.matmul %13, %12, %cst_10 {dimension_numbers = #tpu.dot_dimension_numbers<[1], [0], [0], [1], [0, 0, 1, 1], [], []>} : vector<10x60xf32>, vector<60x128xf32>, vector<10x128xf32> -> vector<10x128xf32>
    %c0_11 = arith.constant 0 : index
    %c0_12 = arith.constant 0 : index
    %15 = vector.load %arg5[%c0_11, %c0_12] : memref<10x1xf32, #tpu.memory_space<vmem>>, vector<10x1xf32>
    %16 = vector.broadcast %15 : vector<10x1xf32> to vector<10x128xf32>
    %17 = arith.addf %14, %16 : vector<10x128xf32>
    %cst_13 = arith.constant 5.000000e-01 : f32
    %18 = vector.broadcast %cst_13 : f32 to vector<10x128xf32>
    %19 = arith.mulf %18, %17 : vector<10x128xf32>
    %20 = math.tanh %19 : vector<10x128xf32>
    %cst_14 = arith.constant 1.000000e+00 : f32
    %21 = vector.broadcast %cst_14 : f32 to vector<10x128xf32>
    %22 = arith.addf %20, %21 : vector<10x128xf32>
    %cst_15 = arith.constant 5.000000e-01 : f32
    %23 = vector.broadcast %cst_15 : f32 to vector<10x128xf32>
    %24 = arith.mulf %23, %22 : vector<10x128xf32>
    %c0_16 = arith.constant 0 : index
    %c0_17 = arith.constant 0 : index
    %25 = vector.load %arg6[%c0_16, %c0_17] : memref<1x10xf32, #tpu.memory_space<vmem>>, vector<1x10xf32>
    %cst_18 = arith.constant dense<0.000000e+00> : vector<1x128xf32>
    %26 = tpu.matmul %25, %24, %cst_18 {dimension_numbers = #tpu.dot_dimension_numbers<[1], [0], [0], [1], [0, 0, 1, 1], [], []>} : vector<1x10xf32>, vector<10x128xf32>, vector<1x128xf32> -> vector<1x128xf32>
    %c0_19 = arith.constant 0 : index
    %c0_20 = arith.constant 0 : index
    %27 = vector.load %arg7[%c0_19, %c0_20] : memref<1x1xf32, #tpu.memory_space<vmem>>, vector<1x1xf32>
    %28 = vector.broadcast %27 : vector<1x1xf32> to vector<1x128xf32>
    %29 = arith.addf %26, %28 : vector<1x128xf32>
    %cst_21 = arith.constant 5.000000e-01 : f32
    %30 = vector.broadcast %cst_21 : f32 to vector<1x128xf32>
    %31 = arith.mulf %30, %29 : vector<1x128xf32>
    %32 = math.tanh %31 : vector<1x128xf32>
    %cst_22 = arith.constant 1.000000e+00 : f32
    %33 = vector.broadcast %cst_22 : f32 to vector<1x128xf32>
    %34 = arith.addf %32, %33 : vector<1x128xf32>
    %cst_23 = arith.constant 5.000000e-01 : f32
    %35 = vector.broadcast %cst_23 : f32 to vector<1x128xf32>
    %36 = arith.mulf %35, %34 : vector<1x128xf32>
    %c0_24 = arith.constant 0 : index
    %c0_25 = arith.constant 0 : index
    %37 = vector.load %arg8[%c0_24, %c0_25] : memref<1x128xf32, #tpu.memory_space<vmem>>, vector<1x128xf32>
    tpu.vector_store %arg8[%c0_24, %c0_25], %36 {strides = array<i32>} : memref<1x128xf32, #tpu.memory_space<vmem>>, vector<1x128xf32>,
    return
  }
  func.func @transform_0(%arg0: i32) -> (i32, i32) {
    %c0_i32 = arith.constant 0 : i32
    %c0_i32_0 = arith.constant 0 : i32
    return %arg0, %c0_i32 : i32, i32
  }
  func.func @transform_1(%arg0: i32) -> (i32, i32) {
    %c0_i32 = arith.constant 0 : i32
    %c0_i32_0 = arith.constant 0 : i32
    %c0_i32_1 = arith.constant 0 : i32
    return %c0_i32, %c0_i32_0 : i32, i32
  }
  func.func @transform_2(%arg0: i32) -> (i32, i32) {
    %c0_i32 = arith.constant 0 : i32
    %c0_i32_0 = arith.constant 0 : i32
    %c0_i32_1 = arith.constant 0 : i32
    return %c0_i32, %c0_i32_0 : i32, i32
  }
  func.func @transform_3(%arg0: i32) -> (i32, i32) {
    %c0_i32 = arith.constant 0 : i32
    %c0_i32_0 = arith.constant 0 : i32
    %c0_i32_1 = arith.constant 0 : i32
    return %c0_i32, %c0_i32_0 : i32, i32
  }
  func.func @transform_4(%arg0: i32) -> (i32, i32) {
    %c0_i32 = arith.constant 0 : i32
    %c0_i32_0 = arith.constant 0 : i32
    %c0_i32_1 = arith.constant 0 : i32
    return %c0_i32, %c0_i32_0 : i32, i32
  }
  func.func @transform_5(%arg0: i32) -> (i32, i32) {
    %c0_i32 = arith.constant 0 : i32
    %c0_i32_0 = arith.constant 0 : i32
    %c0_i32_1 = arith.constant 0 : i32
    return %c0_i32, %c0_i32_0 : i32, i32
  }
  func.func @transform_6(%arg0: i32) -> (i32, i32) {
    %c0_i32 = arith.constant 0 : i32
    %c0_i32_0 = arith.constant 0 : i32
    %c0_i32_1 = arith.constant 0 : i32
    return %c0_i32, %c0_i32_0 : i32, i32
  }
  func.func @transform_7(%arg0: i32) -> (i32, i32) {
    %c0_i32 = arith.constant 0 : i32
    %c0_i32_0 = arith.constant 0 : i32
    return %c0_i32, %arg0 : i32, i32
  }
}

</mosaic_0001>

<llo_original>
// kernel: tpu_custom_call.1
$region0: #{tpu_custom_call.1}
  #allocation0 [shape = 'u32[]', space=smem, size = 0x4, offset = 0x4, fixed_abs, tag = 'smem constant byte address 0x4 - core index']
  #allocation1 [shape = 'u32[144,128]{1,0:T(1,128)}', space=vmem, size = 0x12000, scoped, tag = 'internal scratch']
  #allocation2 [shape = 'f32[1,1]{1,0:T(1,128)S(1)}', space=vmem, size = 0x200, scoped, tag = 'scoped memory for tpu_custom_call.1']
  %s0 = inlined_call_operand.vmem [shape: f32[8,6], index: 0, kind: input, shape index: {}]
  %s1 = inlined_call_operand.vmem [shape: f32[60,6], index: 1, kind: input, shape index: {}]
  %s2 = inlined_call_operand.vmem [shape: f32[60,1], index: 2, kind: input, shape index: {}]
  %s3 = inlined_call_operand.vmem [shape: f32[10,60], index: 3, kind: input, shape index: {}]
  %s4 = inlined_call_operand.vmem [shape: f32[10,1], index: 4, kind: input, shape index: {}]
  %s5 = inlined_call_operand.vmem [shape: f32[1,10], index: 5, kind: input, shape index: {}]
  %s6 = inlined_call_operand.<no memory space> [shape: f32[1,1], index: 6, kind: input, shape index: {}]
  %s7 = inlined_call_operand.hbm [shape: f32[1,8], index: 7, kind: output, shape index: {}]
  %s8 = sld [smem:[#allocation0]]
  $region38: #{tpu_custom_call.1} parent=0
    _
  %s10 = ssub.s32 1, %s8
  %s11 = scalar_select 0, %s10, %s8
  %v12 = vstv %s6
  %13 = vst [vmem:[#allocation2] sm:$0x1] %v12
  $region1: #{tpu_custom_call.1} parent=0
    #allocation3 [shape = 'u8[512]{0}', space=vmem, size = 0x400, scoped, tag = 'output window, operand 0, single buffered']
    #allocation4 [shape = 's32[1]{0}', space=sflag, size = 0x4, scoped, tag = 'scoped memory for tpu_custom_call.1']
    %14 = vsyncpa [#allocation4], 0
    // Predicated region
    $region2: #{tpu_custom_call.1} parent=1 // pred_check
      _
    $region3: #{tpu_custom_call.1} parent=1 // pred_check_branch
      %16 = sbr.rel (0) target = $region5
    $region4: #{tpu_custom_call.1} parent=1 // pred_region
      _
    $region5: #{tpu_custom_call.1} parent=1 // pred_fallthru
      _
    // Predicated region
    $region6: #{tpu_custom_call.1} parent=1 // pred_check
      _
    $region7: #{tpu_custom_call.1} parent=1 // pred_check_branch
      %18 = sbr.rel (0) target = $region9
    $region8: #{tpu_custom_call.1} parent=1 // pred_region
      _
    $region9: #{tpu_custom_call.1} parent=1 // pred_fallthru
      _
    // Predicated region
    $region10: #{tpu_custom_call.1} parent=1 // pred_check
      _
    $region11: #{tpu_custom_call.1} parent=1 // pred_check_branch
      %20 = sbr.rel (0) target = $region13
    $region12: #{tpu_custom_call.1} parent=1 // pred_region
      _
    $region13: #{tpu_custom_call.1} parent=1 // pred_fallthru
      _
    // Predicated region
    $region14: #{tpu_custom_call.1} parent=1 // pred_check
      _
    $region15: #{tpu_custom_call.1} parent=1 // pred_check_branch
      %22 = sbr.rel (0) target = $region17
    $region16: #{tpu_custom_call.1} parent=1 // pred_region
      _
    $region17: #{tpu_custom_call.1} parent=1 // pred_fallthru
      _
    // Predicated region
    $region18: #{tpu_custom_call.1} parent=1 // pred_check
      _
    $region19: #{tpu_custom_call.1} parent=1 // pred_check_branch
      %24 = sbr.rel (0) target = $region21
    $region20: #{tpu_custom_call.1} parent=1 // pred_region
      _
    $region21: #{tpu_custom_call.1} parent=1 // pred_fallthru
      _
    // Predicated region
    $region22: #{tpu_custom_call.1} parent=1 // pred_check
      _
    $region23: #{tpu_custom_call.1} parent=1 // pred_check_branch
      %26 = sbr.rel (0) target = $region25
    $region24: #{tpu_custom_call.1} parent=1 // pred_region
      _
    $region25: #{tpu_custom_call.1} parent=1 // pred_fallthru
      _
    // Predicated region
    $region26: #{tpu_custom_call.1} parent=1 // pred_check
      _
    $region27: #{tpu_custom_call.1} parent=1 // pred_check_branch
      %28 = sbr.rel (0) target = $region29
    $region28: #{tpu_custom_call.1} parent=1 // pred_region
      _
    $region29: #{tpu_custom_call.1} parent=1 // pred_fallthru
      _
    %v29 = vld [vmem:[%s1] sm:$0xff]
    %v30 = vld [vmem:[%s1 + $0x8] sm:$0xff]
    %v31 = vld [vmem:[%s1 + $0x10] sm:$0xff]
    %v32 = vld [vmem:[%s1 + $0x18] sm:$0xff]
    %v33 = vld [vmem:[%s1 + $0x20] sm:$0xff]
    %v34 = vld [vmem:[%s1 + $0x28] sm:$0xff]
    %v35 = vld [vmem:[%s1 + $0x30] sm:$0xff]
    %v36 = vld [vmem:[%s1 + $0x38] sm:$0xf]
    %v37 = vld [vmem:[%s0] sm:$0xff]
    %v38 = vld [vmem:[%s0 + $0x8] sm:$0xff]
    %v39 = vld [vmem:[%s0 + $0x10] sm:$0xff]
    %v40 = vld [vmem:[%s0 + $0x18] sm:$0xff]
    %v41 = vld [vmem:[%s0 + $0x20] sm:$0xff]
    %v42 = vld [vmem:[%s0 + $0x28] sm:$0xff]
    %v43 = vld [vmem:[%s0 + $0x30] sm:$0xff]
    %v44 = vld [vmem:[%s0 + $0x38] sm:$0xff]
    %v45 = vld [vmem:[%s0 + $0x40] sm:$0xff]
    %v46 = vld [vmem:[%s0 + $0x48] sm:$0xff]
    %v47 = vld [vmem:[%s0 + $0x50] sm:$0xff]
    %v48 = vld [vmem:[%s0 + $0x58] sm:$0xff]
    %v49 = vld [vmem:[%s0 + $0x60] sm:$0xff]
    %v50 = vld [vmem:[%s0 + $0x68] sm:$0xff]
    %v51 = vld [vmem:[%s0 + $0x70] sm:$0xff]
    %v52 = vld [vmem:[%s0 + $0x78] sm:$0xff]
    %v53 = vld [vmem:[%s2] sm:$0xff]
    %v54 = vld [vmem:[%s2 + $0x8] sm:$0xff]
    %v55 = vld [vmem:[%s2 + $0x10] sm:$0xff]
    %v56 = vld [vmem:[%s2 + $0x18] sm:$0xff]
    %v57 = vld [vmem:[%s2 + $0x20] sm:$0xff]
    %v58 = vld [vmem:[%s2 + $0x28] sm:$0xff]
    %v59 = vld [vmem:[%s2 + $0x30] sm:$0xff]
    %v60 = vld [vmem:[%s2 + $0x38] sm:$0xf]
    %62 = vset.pattern.permute.xlu0 0
    %63 = vperm.xlu0 %62, %v53
    %v64 = vpop.permute.xlu0 %63
    %67 = vset.pattern.permute.xlu0 0
    %68 = vperm.xlu0 %67, %v54
    %v69 = vpop.permute.xlu0 %68
    %72 = vset.pattern.permute.xlu0 0
    %73 = vperm.xlu0 %72, %v55
    %v74 = vpop.permute.xlu0 %73
    %77 = vset.pattern.permute.xlu0 0
    %78 = vperm.xlu0 %77, %v56
    %v79 = vpop.permute.xlu0 %78
    %82 = vset.pattern.permute.xlu0 0
    %83 = vperm.xlu0 %82, %v57
    %v84 = vpop.permute.xlu0 %83
    %87 = vset.pattern.permute.xlu0 0
    %88 = vperm.xlu0 %87, %v58
    %v89 = vpop.permute.xlu0 %88
    %92 = vset.pattern.permute.xlu0 0
    %93 = vperm.xlu0 %92, %v59
    %v94 = vpop.permute.xlu0 %93
    %97 = vset.pattern.permute.xlu0 0
    %98 = vperm.xlu0 %97, %v60
    %v99 = vpop.permute.xlu0 %98
    %vm101 = vcmask 48128
    %v103 = vsel %vm101, %v29, 0
    %v106 = vsel %vm101, %v30, 0
    %v109 = vsel %vm101, %v31, 0
    %v112 = vsel %vm101, %v32, 0
    %v115 = vsel %vm101, %v33, 0
    %v118 = vsel %vm101, %v34, 0
    %v121 = vsel %vm101, %v35, 0
    %v124 = vsel %vm101, %v36, 0
    %v127 = vsel %vm101, %v37, 0
    %v130 = vsel %vm101, %v38, 0
    %v133 = vsel %vm101, %v39, 0
    %v136 = vsel %vm101, %v40, 0
    %v139 = vsel %vm101, %v41, 0
    %v142 = vsel %vm101, %v42, 0
    %v145 = vsel %vm101, %v43, 0
    %v148 = vsel %vm101, %v44, 0
    %v151 = vsel %vm101, %v45, 0
    %v154 = vsel %vm101, %v46, 0
    %v157 = vsel %vm101, %v47, 0
    %v160 = vsel %vm101, %v48, 0
    %v163 = vsel %vm101, %v49, 0
    %v166 = vsel %vm101, %v50, 0
    %v169 = vsel %vm101, %v51, 0
    %v172 = vsel %vm101, %v52, 0
    %174 = vmatprep.subr.mxu0 0.0
    %175 = vmatpush1.xpose.msra.mxu0 %v127
    %176 = vmatprep.subr.mxu0 0.0
    %177 = vmatpush1.xpose.msra.mxu0 %v130
    %178 = vmatprep.subr.mxu0 0.0
    %179 = vmatpush1.xpose.msra.mxu0 %v133
    %180 = vmatprep.subr.mxu0 0.0
    %181 = vmatpush1.xpose.msra.mxu0 %v136
    %182 = vmatprep.subr.mxu0 0.0
    %183 = vmatpush1.xpose.msra.mxu0 %v139
    %184 = vmatprep.subr.mxu0 0.0
    %185 = vmatpush1.xpose.msra.mxu0 %v142
    %186 = vmatprep.subr.mxu0 0.0
    %187 = vmatpush1.xpose.msra.mxu0 %v145
    %188 = vmatprep.subr.mxu0 0.0
    %189 = vmatpush1.xpose.msra.mxu0 %v148
    %190 = vmatprep.subr.mxu0 0.0
    %191 = vmatpush1.xpose.msra.mxu0 %v151
    %192 = vmatprep.subr.mxu0 0.0
    %193 = vmatpush1.xpose.msra.mxu0 %v154
    %194 = vmatprep.subr.mxu0 0.0
    %195 = vmatpush1.xpose.msra.mxu0 %v157
    %196 = vmatprep.subr.mxu0 0.0
    %197 = vmatpush1.xpose.msra.mxu0 %v160
    %198 = vmatprep.subr.mxu0 0.0
    %199 = vmatpush1.xpose.msra.mxu0 %v163
    %200 = vmatprep.subr.mxu0 0.0
    %201 = vmatpush1.xpose.msra.mxu0 %v166
    %202 = vmatprep.subr.mxu0 0.0
    %203 = vmatpush1.xpose.msra.mxu0 %v169
    %204 = vmatprep.subr.mxu0 0.0
    %205 = vmatpush1.xpose.msra.mxu0 %v172
    %206 = vmatprep.subr.mxu0 0.0
    %207 = vmatpush1.xpose.msra.mxu0 0.0
    %208 = vmatprep.subr.mxu0 0.0
    %209 = vmatpush1.xpose.msra.mxu0 0.0
    %210 = vmatprep.subr.mxu0 0.0
    %211 = vmatpush1.xpose.msra.mxu0 0.0
    %212 = vmatprep.subr.mxu0 0.0
    %213 = vmatpush1.xpose.msra.mxu0 0.0
    %214 = vmatprep.subr.mxu0 0.0
    %215 = vmatpush1.xpose.msra.mxu0 0.0
    %216 = vmatprep.subr.mxu0 0.0
    %217 = vmatpush1.xpose.msra.mxu0 0.0
    %218 = vmatprep.subr.mxu0 0.0
    %219 = vmatpush1.xpose.msra.mxu0 0.0
    %220 = vmatprep.subr.mxu0 0.0
    %221 = vmatpush1.xpose.msra.mxu0 0.0
    %222 = vmatprep.subr.mxu0 0.0
    %223 = vmatpush1.xpose.msra.mxu0 0.0
    %224 = vmatprep.subr.mxu0 0.0
    %225 = vmatpush1.xpose.msra.mxu0 0.0
    %226 = vmatprep.subr.mxu0 0.0
    %227 = vmatpush1.xpose.msra.mxu0 0.0
    %228 = vmatprep.subr.mxu0 0.0
    %229 = vmatpush1.xpose.msra.mxu0 0.0
    %230 = vmatprep.subr.mxu0 0.0
    %231 = vmatpush1.xpose.msra.mxu0 0.0
    %232 = vmatprep.subr.mxu0 0.0
    %233 = vmatpush1.xpose.msra.mxu0 0.0
    %234 = vmatprep.subr.mxu0 0.0
    %235 = vmatpush1.xpose.msra.mxu0 0.0
    %236 = vmatprep.subr.mxu0 0.0
    %237 = vmatpush1.xpose.msra.mxu0 0.0
    %238 = vmatprep.mubr.f32.mxu0 0.0
    %239 = vmatmul.mubr.f32.gmra.mrb[0].mxu0 %v103
    %v240 = vpop.f32.mrb[0].mxu0
    %v241 = vadd.f32 %v64, %v240
    %v242 = vpop.f32.mrb[0].mxu0
    %243 = vmatprep.mubr.f32.mxu0 0.0
    %244 = vmatmul.mubr.f32.gmra.mrb[0].mxu0 %v106
    %v245 = vpop.f32.mrb[0].mxu0
    %v246 = vadd.f32 %v69, %v245
    %v247 = vpop.f32.mrb[0].mxu0
    %248 = vmatprep.mubr.f32.mxu0 0.0
    %249 = vmatmul.mubr.f32.gmra.mrb[0].mxu0 %v109
    %v250 = vpop.f32.mrb[0].mxu0
    %v251 = vadd.f32 %v74, %v250
    %v252 = vpop.f32.mrb[0].mxu0
    %253 = vmatprep.mubr.f32.mxu0 0.0
    %254 = vmatmul.mubr.f32.gmra.mrb[0].mxu0 %v112
    %v255 = vpop.f32.mrb[0].mxu0
    %v256 = vadd.f32 %v79, %v255
    %v257 = vpop.f32.mrb[0].mxu0
    %258 = vmatprep.mubr.f32.mxu0 0.0
    %259 = vmatmul.mubr.f32.gmra.mrb[0].mxu0 %v115
    %v260 = vpop.f32.mrb[0].mxu0
    %v261 = vadd.f32 %v84, %v260
    %v262 = vpop.f32.mrb[0].mxu0
    %263 = vmatprep.mubr.f32.mxu0 0.0
    %264 = vmatmul.mubr.f32.gmra.mrb[0].mxu0 %v118
    %v265 = vpop.f32.mrb[0].mxu0
    %v266 = vadd.f32 %v89, %v265
    %v267 = vpop.f32.mrb[0].mxu0
    %268 = vmatprep.mubr.f32.mxu0 0.0
    %269 = vmatmul.mubr.f32.gmra.mrb[0].mxu0 %v121
    %v270 = vpop.f32.mrb[0].mxu0
    %v271 = vadd.f32 %v94, %v270
    %v272 = vpop.f32.mrb[0].mxu0
    %273 = vmatprep.mubr.f32.mxu0 0.0
    %274 = vmatmul.mubr.f32.gmra.mrb[0].mxu0 %v124
    %v275 = vpop.f32.mrb[0].mxu0
    %v276 = vadd.f32 %v99, %v275
    %v277 = vpop.f32.mrb[0].mxu0
    %278 = vdwg.mxu0
    %v279 = vmul.f32 %v241, 0.5
    %v280 = vmul.f32 %v246, 0.5
    %v281 = vmul.f32 %v251, 0.5
    %v282 = vmul.f32 %v256, 0.5
    %v283 = vmul.f32 %v261, 0.5
    %v284 = vmul.f32 %v266, 0.5
    %v285 = vmul.f32 %v271, 0.5
    %v286 = vmul.f32 %v276, 0.5
    %v287 = vtanh.pop %v279
    %v288 = vtanh.pop %v280
    %v289 = vtanh.pop %v281
    %v290 = vtanh.pop %v282
    %v291 = vtanh.pop %v283
    %v292 = vtanh.pop %v284
    %v293 = vtanh.pop %v285
    %v294 = vtanh.pop %v286
    %v295 = vadd.f32 %v287, 1.0
    %v296 = vadd.f32 %v288, 1.0
    %v297 = vadd.f32 %v289, 1.0
    %v298 = vadd.f32 %v290, 1.0
    %v299 = vadd.f32 %v291, 1.0
    %v300 = vadd.f32 %v292, 1.0
    %v301 = vadd.f32 %v293, 1.0
    %v302 = vadd.f32 %v294, 1.0
    %v303 = vmul.f32 %v295, 0.5
    %v304 = vmul.f32 %v296, 0.5
    %v305 = vmul.f32 %v297, 0.5
    %v306 = vmul.f32 %v298, 0.5
    %v307 = vmul.f32 %v299, 0.5
    %v308 = vmul.f32 %v300, 0.5
    %v309 = vmul.f32 %v301, 0.5
    %v310 = vmul.f32 %v302, 0.5
    %v311 = vld [vmem:[%s3] sm:$0xff]
    %v312 = vld [vmem:[%s3 + $0x8] sm:$0x3]
    %v313 = vld [vmem:[%s4] sm:$0xff]
    %v314 = vld [vmem:[%s4 + $0x8] sm:$0x3]
    %316 = vset.pattern.permute.xlu0 0
    %317 = vperm.xlu0 %316, %v313
    %v318 = vpop.permute.xlu0 %317
    %321 = vset.pattern.permute.xlu0 0
    %322 = vperm.xlu0 %321, %v314
    %v323 = vpop.permute.xlu0 %322
    %vm325 = vcmask 490496
    %v327 = vsel %vm325, %v311, 0
    %v330 = vsel %vm325, %v312, 0
    %vm332 = vcmask 1043456
    %v334 = vsel %vm332, %v310, 0
    %336 = vmatprep.subr.mxu0 0.0
    %337 = vmatpush1.msra.mxu0 %v303
    %338 = vmatprep.subr.mxu0 0.0
    %339 = vmatpush1.msra.mxu0 %v304
    %340 = vmatprep.subr.mxu0 0.0
    %341 = vmatpush1.msra.mxu0 %v305
    %342 = vmatprep.subr.mxu0 0.0
    %343 = vmatpush1.msra.mxu0 %v306
    %344 = vmatprep.subr.mxu0 0.0
    %345 = vmatpush1.msra.mxu0 %v307
    %346 = vmatprep.subr.mxu0 0.0
    %347 = vmatpush1.msra.mxu0 %v308
    %348 = vmatprep.subr.mxu0 0.0
    %349 = vmatpush1.msra.mxu0 %v309
    %350 = vmatprep.subr.mxu0 0.0
    %351 = vmatpush1.msra.mxu0 %v334
    %352 = vmatprep.subr.mxu0 0.0
    %353 = vmatpush1.msra.mxu0 0.0
    %354 = vmatprep.subr.mxu0 0.0
    %355 = vmatpush1.msra.mxu0 0.0
    %356 = vmatprep.subr.mxu0 0.0
    %357 = vmatpush1.msra.mxu0 0.0
    %358 = vmatprep.subr.mxu0 0.0
    %359 = vmatpush1.msra.mxu0 0.0
    %360 = vmatprep.subr.mxu0 0.0
    %361 = vmatpush1.msra.mxu0 0.0
    %362 = vmatprep.subr.mxu0 0.0
    %363 = vmatpush1.msra.mxu0 0.0
    %364 = vmatprep.subr.mxu0 0.0
    %365 = vmatpush1.msra.mxu0 0.0
    %366 = vmatprep.subr.mxu0 0.0
    %367 = vmatpush1.msra.mxu0 0.0
    %368 = vmatprep.subr.mxu0 0.0
    %369 = vmatpush1.msra.mxu0 0.0
    %370 = vmatprep.subr.mxu0 0.0
    %371 = vmatpush1.msra.mxu0 0.0
    %372 = vmatprep.subr.mxu0 0.0
    %373 = vmatpush1.msra.mxu0 0.0
    %374 = vmatprep.subr.mxu0 0.0
    %375 = vmatpush1.msra.mxu0 0.0
    %376 = vmatprep.subr.mxu0 0.0
    %377 = vmatpush1.msra.mxu0 0.0
    %378 = vmatprep.subr.mxu0 0.0
    %379 = vmatpush1.msra.mxu0 0.0
    %380 = vmatprep.subr.mxu0 0.0
    %381 = vmatpush1.msra.mxu0 0.0
    %382 = vmatprep.subr.mxu0 0.0
    %383 = vmatpush1.msra.mxu0 0.0
    %384 = vmatprep.subr.mxu0 0.0
    %385 = vmatpush1.msra.mxu0 0.0
    %386 = vmatprep.subr.mxu0 0.0
    %387 = vmatpush1.msra.mxu0 0.0
    %388 = vmatprep.subr.mxu0 0.0
    %389 = vmatpush1.msra.mxu0 0.0
    %390 = vmatprep.subr.mxu0 0.0
    %391 = vmatpush1.msra.mxu0 0.0
    %392 = vmatprep.subr.mxu0 0.0
    %393 = vmatpush1.msra.mxu0 0.0
    %394 = vmatprep.subr.mxu0 0.0
    %395 = vmatpush1.msra.mxu0 0.0
    %396 = vmatprep.subr.mxu0 0.0
    %397 = vmatpush1.msra.mxu0 0.0
    %398 = vmatprep.subr.mxu0 0.0
    %399 = vmatpush1.msra.mxu0 0.0
    %400 = vmatprep.mubr.f32.mxu0 0.0
    %401 = vmatmul.mubr.f32.gmra.mrb[0].mxu0 %v327
    %v402 = vpop.f32.mrb[0].mxu0
    %v403 = vadd.f32 %v318, %v402
    %v404 = vpop.f32.mrb[0].mxu0
    %405 = vmatprep.mubr.f32.mxu0 0.0
    %406 = vmatmul.mubr.f32.gmra.mrb[0].mxu0 %v330
    %v407 = vpop.f32.mrb[0].mxu0
    %v408 = vadd.f32 %v323, %v407
    %v409 = vpop.f32.mrb[0].mxu0
    %410 = vdwg.mxu0
    %v411 = vmul.f32 %v403, 0.5
    %v412 = vmul.f32 %v408, 0.5
    %v413 = vtanh.pop %v411
    %v414 = vtanh.pop %v412
    %v415 = vadd.f32 %v413, 1.0
    %v416 = vadd.f32 %v414, 1.0
    %v417 = vmul.f32 %v415, 0.5
    %v418 = vmul.f32 %v416, 0.5
    %v419 = vld [vmem:[%s5] sm:$0x1]
    %v420 = vld [vmem:[#allocation2] sm:$0x1]
    %422 = vset.pattern.permute.xlu0 0
    %423 = vperm.xlu0 %422, %v420
    %v424 = vpop.permute.xlu0 %423
    %v426 = vlaneseq
    %v427 = vshrl.u32 %v426, 7
    %v428 = vsub.s32 0, %v427
    %v429 = vrot.slane %v424, %v428
    %vm430 = vcmask 80896
    %v432 = vsel %vm430, %v419, 0
    %vm434 = vcmask 1041408
    %v436 = vsel %vm434, %v418, 0
    %438 = vmatprep.subr.mxu0 0.0
    %439 = vmatpush1.msra.mxu0 %v417
    %440 = vmatprep.subr.mxu0 0.0
    %441 = vmatpush1.msra.mxu0 %v436
    %442 = vmatprep.subr.mxu0 0.0
    %443 = vmatpush1.msra.mxu0 0.0
    %444 = vmatprep.subr.mxu0 0.0
    %445 = vmatpush1.msra.mxu0 0.0
    %446 = vmatprep.subr.mxu0 0.0
    %447 = vmatpush1.msra.mxu0 0.0
    %448 = vmatprep.subr.mxu0 0.0
    %449 = vmatpush1.msra.mxu0 0.0
    %450 = vmatprep.subr.mxu0 0.0
    %451 = vmatpush1.msra.mxu0 0.0
    %452 = vmatprep.subr.mxu0 0.0
    %453 = vmatpush1.msra.mxu0 0.0
    %454 = vmatprep.subr.mxu0 0.0
    %455 = vmatpush1.msra.mxu0 0.0
    %456 = vmatprep.subr.mxu0 0.0
    %457 = vmatpush1.msra.mxu0 0.0
    %458 = vmatprep.subr.mxu0 0.0
    %459 = vmatpush1.msra.mxu0 0.0
    %460 = vmatprep.subr.mxu0 0.0
    %461 = vmatpush1.msra.mxu0 0.0
    %462 = vmatprep.subr.mxu0 0.0
    %463 = vmatpush1.msra.mxu0 0.0
    %464 = vmatprep.subr.mxu0 0.0
    %465 = vmatpush1.msra.mxu0 0.0
    %466 = vmatprep.subr.mxu0 0.0
    %467 = vmatpush1.msra.mxu0 0.0
    %468 = vmatprep.subr.mxu0 0.0
    %469 = vmatpush1.msra.mxu0 0.0
    %470 = vmatprep.subr.mxu0 0.0
    %471 = vmatpush1.msra.mxu0 0.0
    %472 = vmatprep.subr.mxu0 0.0
    %473 = vmatpush1.msra.mxu0 0.0
    %474 = vmatprep.subr.mxu0 0.0
    %475 = vmatpush1.msra.mxu0 0.0
    %476 = vmatprep.subr.mxu0 0.0
    %477 = vmatpush1.msra.mxu0 0.0
    %478 = vmatprep.subr.mxu0 0.0
    %479 = vmatpush1.msra.mxu0 0.0
    %480 = vmatprep.subr.mxu0 0.0
    %481 = vmatpush1.msra.mxu0 0.0
    %482 = vmatprep.subr.mxu0 0.0
    %483 = vmatpush1.msra.mxu0 0.0
    %484 = vmatprep.subr.mxu0 0.0
    %485 = vmatpush1.msra.mxu0 0.0
    %486 = vmatprep.subr.mxu0 0.0
    %487 = vmatpush1.msra.mxu0 0.0
    %488 = vmatprep.subr.mxu0 0.0
    %489 = vmatpush1.msra.mxu0 0.0
    %490 = vmatprep.subr.mxu0 0.0
    %491 = vmatpush1.msra.mxu0 0.0
    %492 = vmatprep.subr.mxu0 0.0
    %493 = vmatpush1.msra.mxu0 0.0
    %494 = vmatprep.subr.mxu0 0.0
    %495 = vmatpush1.msra.mxu0 0.0
    %496 = vmatprep.subr.mxu0 0.0
    %497 = vmatpush1.msra.mxu0 0.0
    %498 = vmatprep.subr.mxu0 0.0
    %499 = vmatpush1.msra.mxu0 0.0
    %500 = vmatprep.subr.mxu0 0.0
    %501 = vmatpush1.msra.mxu0 0.0
    %502 = vmatprep.mubr.f32.mxu0 0.0
    %503 = vmatmul.mubr.f32.gmra.mrb[0].mxu0 %v432
    %v504 = vpop.f32.mrb[0].mxu0
    %v505 = vadd.f32 %v429, %v504
    %v506 = vpop.f32.mrb[0].mxu0
    %507 = vdwg.mxu0
    %v508 = vmul.f32 %v505, 0.5
    %v509 = vtanh.pop %v508
    %v510 = vadd.f32 %v509, 1.0
    %v511 = vmul.f32 %v510, 0.5
    %512 = vst [vmem:[#allocation3] sm:$0x1] %v511
    // Predicated region
    $region30: #{tpu_custom_call.1} parent=1 // pred_check
      _
    $region31: #{tpu_custom_call.1} parent=1 // pred_check_branch
      %514 = sbr.rel (0) target = $region33
    $region32: #{tpu_custom_call.1} parent=1 // pred_region
      %s516 = ssub.s32 16, 16
      %517 = vsyncadd [#allocation4], %s516
      %s519 = sshll.u32 [#allocation3], 4
      %s520 = int_to_ptr.vmem [resolvable:$true] %s519
      %522 = dma.vmem_to_hbm [thread:$0]  %s520, 16, %s7, [#allocation4]
    $region33: #{tpu_custom_call.1} parent=1 // pred_fallthru
      _
    // Predicated region
    $region34: #{tpu_custom_call.1} parent=1 // pred_check
      _
    $region35: #{tpu_custom_call.1} parent=1 // pred_check_branch
      %524 = sbr.rel (0) target = $region37
    $region36: #{tpu_custom_call.1} parent=1 // pred_region
      %525 = dma.done [#allocation4], 16
    $region37: #{tpu_custom_call.1} parent=1 // pred_fallthru
      _
    %526 = vsyncpa [#allocation4], 1

</llo_original>
